<compile_context>
chip_gen: v7x
topology: tpu7x:2x2x1
jax: 0.10.0
libtpu: 0.0.40
codegen_flags: <defaults>
</compile_context>

<pallas_src>
import jax
import jax.numpy as jnp
import numpy as np
from jax.experimental import pallas as pl
from jax.experimental.pallas import tpu as pltpu

WIN = 7          # win_size
K1 = 0.01
K2 = 0.03
NP_ = float(WIN * WIN)
COV_NORM = NP_ / (NP_ - 1.0)


def _ssim_kernel(x_ref, y_ref, a_ref, b_ref, c1_ref, c2_ref, w_ref, out_ref):
    X = x_ref[0]              # (H, NB*W)      f32, NB images packed along lanes
    Y = y_ref[0]              # (H, NB*W)      f32
    A = a_ref[...]            # (Ho, H)        f32 band of ones (row box-sum)
    B = b_ref[...]            # (NB*W, NB*Wo)  f32 block-diag band / 49

    nbw = X.shape[-1]         # NB*W (static)

    # Five quantities fused along lanes -> one wide stage-1 matmul on the MXU.
    Z = jnp.concatenate([X, Y, X * X, Y * Y, X * Y], axis=-1)     # (H, 5*NB*W)
    T = jnp.dot(A, Z, preferred_element_type=jnp.float32)         # (Ho, 5*NB*W)

    # Stage 2: column box-mean.  B is block-diag over images only, so the five
    # quantities share the same small operand (5x fewer FLOPs / 25x less band
    # VMEM than a block-diag over 5*NB as in v2).
    def col(q):
        return jnp.dot(T[:, q * nbw:(q + 1) * nbw], B,
                       preferred_element_type=jnp.float32)        # (Ho, NB*Wo)

    ux, uy, uxx, uyy, uxy = col(0), col(1), col(2), col(3), col(4)

    C1 = c1_ref[0]            # (1, NB*Wo) per-image (k1*data_range)^2
    C2 = c2_ref[0]            # (1, NB*Wo) per-image (k2*data_range)^2
    Wt = w_ref[0]             # (1, NB*Wo) 1 for real images, 0 for batch padding

    vx = COV_NORM * (uxx - ux * ux)
    vy = COV_NORM * (uyy - uy * uy)
    vxy = COV_NORM * (uxy - ux * uy)

    A1 = 2.0 * ux * uy + C1
    A2 = 2.0 * vxy + C2
    B1 = ux * ux + uy * uy + C1
    B2 = vx + vy + C2
    S = (A1 * A2) / (B1 * B2)                 # (Ho, NB*Wo) SSIM map (NB images)

    out_ref[...] = jnp.sum(S * Wt).reshape(1, 1, 1)    # per-chunk partial sum


def ssim_pallas(X, Y, data_range, mask=None, use_roi=False, win_size=WIN):
    """Matches SSIM.forward(X, Y, data_range, mask, use_roi) -> scalar mean."""
    if use_roi:
        X = X * mask
        Y = Y * mask
    N, C, H, W = X.shape
    assert C == 1, "SSIM conv weight is (1,1,7,7): single-channel inputs only"
    Ho, Wo = H - win_size + 1, W - win_size + 1

    # ---- images per grid step (NB); pad batch to a multiple of NB.
    if N <= 8:
        NB = N                                # whole batch in one step
    elif (8 * W) % 128 == 0 and H % 8 == 0:
        NB = 8                                # lane-dense packing (NB*W % 128 == 0)
    else:
        NB = N                                # fall back to a single big chunk
    num_chunks = -(-N // NB)
    Npad = num_chunks * NB
    pad = Npad - N

    f32 = jnp.float32
    Xs = X.reshape(N, H, W).astype(f32)
    Ys = Y.reshape(N, H, W).astype(f32)
    dr = data_range.reshape(N).astype(f32)
    wt = jnp.ones((N,), f32)
    if pad:
        Xs = jnp.concatenate([Xs, jnp.zeros((pad, H, W), f32)], axis=0)
        Ys = jnp.concatenate([Ys, jnp.zeros((pad, H, W), f32)], axis=0)
        dr = jnp.concatenate([dr, jnp.ones((pad,), f32)], axis=0)
        wt = jnp.concatenate([wt, jnp.zeros((pad,), f32)], axis=0)

    # ---- wrapper-side layout plumbing: (Npad,H,W) -> (chunks, H, NB*W)
    Xr = Xs.reshape(num_chunks, NB, H, W).transpose(0, 2, 1, 3).reshape(
        num_chunks, H, NB * W)
    Yr = Ys.reshape(num_chunks, NB, H, W).transpose(0, 2, 1, 3).reshape(
        num_chunks, H, NB * W)

    # ---- per-image constants as lane vectors (image-major, Wo lanes each).
    c1v = jnp.repeat((K1 * dr) ** 2, Wo).reshape(num_chunks, 1, NB * Wo)
    c2v = jnp.repeat((K2 * dr) ** 2, Wo).reshape(num_chunks, 1, NB * Wo)
    wtv = jnp.repeat(wt, Wo).reshape(num_chunks, 1, NB * Wo)

    # ---- band matrices implementing the 'valid' box filter as two matmuls.
    ar = np.arange(H)[None, :]
    ro = np.arange(Ho)[:, None]
    Aband = ((ar >= ro) & (ar < ro + win_size)).astype(np.float32)   # (Ho, H)
    rw = np.arange(W)[:, None]
    co = np.arange(Wo)[None, :]
    band = (((rw >= co) & (rw < co + win_size)).astype(np.float32)
            / float(win_size * win_size))                            # (W, Wo)/49
    Bm = np.kron(np.eye(NB, dtype=np.float32), band)                 # (NB*W, NB*Wo)

    A_f = jnp.asarray(Aband, dtype=jnp.float32)
    Bm_f = jnp.asarray(Bm, dtype=jnp.float32)

    flops = int(num_chunks * (2 * Ho * H * (5 * NB * W)
                              + 5 * 2 * Ho * (NB * W) * (NB * Wo)
                              + 30 * Ho * NB * Wo))
    bytes_accessed = int((Xr.size + Yr.size) * 4 + A_f.size * 4 + Bm_f.size * 4
                         + 3 * num_chunks * NB * Wo * 4 + num_chunks * 4)

    out = pl.pallas_call(
        _ssim_kernel,
        out_shape=jax.ShapeDtypeStruct((num_chunks, 1, 1), jnp.float32),
        grid_spec=pltpu.PrefetchScalarGridSpec(
            num_scalar_prefetch=0,
            grid=(num_chunks,),
            in_specs=[
                pl.BlockSpec((1, H, NB * W), lambda c: (c, 0, 0)),       # X
                pl.BlockSpec((1, H, NB * W), lambda c: (c, 0, 0)),       # Y
                pl.BlockSpec((Ho, H), lambda c: (0, 0)),                 # A (row band)
                pl.BlockSpec((NB * W, NB * Wo), lambda c: (0, 0)),       # B (col band)
                pl.BlockSpec((1, 1, NB * Wo), lambda c: (c, 0, 0)),      # C1
                pl.BlockSpec((1, 1, NB * Wo), lambda c: (c, 0, 0)),      # C2
                pl.BlockSpec((1, 1, NB * Wo), lambda c: (c, 0, 0)),      # weight
            ],
            out_specs=pl.BlockSpec((1, 1, 1), lambda c: (c, 0, 0)),
        ),
        compiler_params=pltpu.CompilerParams(
            dimension_semantics=("parallel",)),
        cost_estimate=pl.CostEstimate(
            flops=flops, transcendentals=0, bytes_accessed=bytes_accessed),
    )(Xr, Yr, A_f, Bm_f, c1v, c2v, wtv)

    return jnp.sum(out) / (N * Ho * Wo)


def ssim_ref(X, Y, data_range):
    """Pure-JAX reference mirroring the PyTorch forward (NCHW valid conv)."""
    w = jnp.ones((1, 1, WIN, WIN), jnp.float32) / float(WIN * WIN)
    dr = data_range[:, None, None, None]
    C1 = (K1 * dr) ** 2
    C2 = (K2 * dr) ** 2
    conv = lambda z: jax.lax.conv_general_dilated(
        z, w, window_strides=(1, 1), padding='VALID',
        dimension_numbers=('NCHW', 'OIHW', 'NCHW'))
    ux, uy = conv(X), conv(Y)
    uxx, uyy, uxy = conv(X * X), conv(Y * Y), conv(X * Y)
    vx = COV_NORM * (uxx - ux * ux)
    vy = COV_NORM * (uyy - uy * uy)
    vxy = COV_NORM * (uxy - ux * uy)
    A1 = 2 * ux * uy + C1
    A2 = 2 * vxy + C2
    B1 = ux ** 2 + uy ** 2 + C1
    B2 = vx + vy + C2
    return (A1 * A2 / (B1 * B2)).mean()


if __name__ == "__main__":
    key = jax.random.PRNGKey(0)
    kx, kn = jax.random.split(key)
    N, C, H, W = 2, 1, 16, 16                     # C=1 per module's conv weight
    X = jax.random.uniform(kx, (N, C, H, W), jnp.float32)
    # Typical SSIM use-case: compare an image against a lightly-noised copy.
    Y = jnp.clip(X + 0.05 * jax.random.normal(kn, (N, C, H, W), jnp.float32),
                 0.0, 1.0)
    data_range = jnp.max(X.reshape(N, -1), axis=-1)   # per-image data range (N,)

    out = jax.block_until_ready(ssim_pallas(X, Y, data_range))
    ref = jax.block_until_ready(ssim_ref(X, Y, data_range))
    np.testing.assert_allclose(np.asarray(out), np.asarray(ref),
                               rtol=2e-3, atol=5e-4)
    print("KERNEL_OK")
</pallas_src>

<mosaic_0001>
module attributes {stable_mosaic.version = 11 : i64} {
  func.func @_ssim_kernel(%arg0: i32, %arg1: memref<1x16x32xf32, #tpu.memory_space<vmem>>, %arg2: memref<1x16x32xf32, #tpu.memory_space<vmem>>, %arg3: memref<10x16xf32, #tpu.memory_space<vmem>>, %arg4: memref<32x20xf32, #tpu.memory_space<vmem>>, %arg5: memref<1x1x20xf32, #tpu.memory_space<vmem>>, %arg6: memref<1x1x20xf32, #tpu.memory_space<vmem>>, %arg7: memref<1x1x20xf32, #tpu.memory_space<vmem>>, %arg8: memref<1x1x1xf32, #tpu.memory_space<vmem>>) attributes {dimension_semantics = [#tpu.dimension_semantics<parallel>], iteration_bounds = array<i64: 1>, scalar_prefetch = 0 : i64, scratch_operands = 0 : i64, tpu.core_type = #tpu.core_type<tc>, window_params = [{transform_indices = @transform_0, window_bounds = array<i64: 1, 16, 32>}, {transform_indices = @transform_1, window_bounds = array<i64: 1, 16, 32>}, {pipeline_mode = #tpu.pipeline_mode<synchronous>, transform_indices = @transform_2, window_bounds = array<i64: 10, 16>}, {pipeline_mode = #tpu.pipeline_mode<synchronous>, transform_indices = @transform_3, window_bounds = array<i64: 32, 20>}, {transform_indices = @transform_4, window_bounds = array<i64: 1, 1, 20>}, {transform_indices = @transform_5, window_bounds = array<i64: 1, 1, 20>}, {transform_indices = @transform_6, window_bounds = array<i64: 1, 1, 20>}, {transform_indices = @transform_7, window_bounds = array<i64: 1, 1, 1>}]} {
    %c0 = arith.constant 0 : index
    %c0_0 = arith.constant 0 : index
    %c0_1 = arith.constant 0 : index
    %0 = vector.load %arg1[%c0, %c0_0, %c0_1] : memref<1x16x32xf32, #tpu.memory_space<vmem>>, vector<1x16x32xf32>
    %1 = vector.shape_cast %0 : vector<1x16x32xf32> to vector<16x32xf32>
    %c0_2 = arith.constant 0 : index
    %c0_3 = arith.constant 0 : index
    %c0_4 = arith.constant 0 : index
    %2 = vector.load %arg2[%c0_2, %c0_3, %c0_4] : memref<1x16x32xf32, #tpu.memory_space<vmem>>, vector<1x16x32xf32>
    %3 = vector.shape_cast %2 : vector<1x16x32xf32> to vector<16x32xf32>
    %c0_5 = arith.constant 0 : index
    %c0_6 = arith.constant 0 : index
    %4 = vector.load %arg3[%c0_5, %c0_6] : memref<10x16xf32, #tpu.memory_space<vmem>>, vector<10x16xf32>
    %c0_7 = arith.constant 0 : index
    %c0_8 = arith.constant 0 : index
    %5 = vector.load %arg4[%c0_7, %c0_8] : memref<32x20xf32, #tpu.memory_space<vmem>>, vector<32x20xf32>
    %6 = arith.mulf %1, %1 : vector<16x32xf32>
    %7 = arith.mulf %3, %3 : vector<16x32xf32>
    %8 = arith.mulf %1, %3 : vector<16x32xf32>
    %9 = tpu.concatenate %1, %3, %6, %7, %8 in 1 : vector<16x32xf32>, vector<16x32xf32>, vector<16x32xf32>, vector<16x32xf32>, vector<16x32xf32> -> vector<16x160xf32>
    %cst = arith.constant dense<0.000000e+00> : vector<10x160xf32>
    %10 = tpu.matmul %4, %9, %cst {dimension_numbers = #tpu.dot_dimension_numbers<[1], [0], [0], [1], [0, 0, 1, 1], [], []>} : vector<10x16xf32>, vector<16x160xf32>, vector<10x160xf32> -> vector<10x160xf32>
    %11 = vector.extract_strided_slice %10 {offsets = [0, 0], sizes = [10, 32], strides = [1, 1]} : vector<10x160xf32> to vector<10x32xf32>
    %cst_9 = arith.constant dense<0.000000e+00> : vector<10x20xf32>
    %12 = tpu.matmul %11, %5, %cst_9 {dimension_numbers = #tpu.dot_dimension_numbers<[1], [0], [0], [1], [0, 0, 1, 1], [], []>} : vector<10x32xf32>, vector<32x20xf32>, vector<10x20xf32> -> vector<10x20xf32>
    %13 = vector.extract_strided_slice %10 {offsets = [0, 32], sizes = [10, 32], strides = [1, 1]} : vector<10x160xf32> to vector<10x32xf32>
    %cst_10 = arith.constant dense<0.000000e+00> : vector<10x20xf32>
    %14 = tpu.matmul %13, %5, %cst_10 {dimension_numbers = #tpu.dot_dimension_numbers<[1], [0], [0], [1], [0, 0, 1, 1], [], []>} : vector<10x32xf32>, vector<32x20xf32>, vector<10x20xf32> -> vector<10x20xf32>
    %15 = vector.extract_strided_slice %10 {offsets = [0, 64], sizes = [10, 32], strides = [1, 1]} : vector<10x160xf32> to vector<10x32xf32>
    %cst_11 = arith.constant dense<0.000000e+00> : vector<10x20xf32>
    %16 = tpu.matmul %15, %5, %cst_11 {dimension_numbers = #tpu.dot_dimension_numbers<[1], [0], [0], [1], [0, 0, 1, 1], [], []>} : vector<10x32xf32>, vector<32x20xf32>, vector<10x20xf32> -> vector<10x20xf32>
    %17 = vector.extract_strided_slice %10 {offsets = [0, 96], sizes = [10, 32], strides = [1, 1]} : vector<10x160xf32> to vector<10x32xf32>
    %cst_12 = arith.constant dense<0.000000e+00> : vector<10x20xf32>
    %18 = tpu.matmul %17, %5, %cst_12 {dimension_numbers = #tpu.dot_dimension_numbers<[1], [0], [0], [1], [0, 0, 1, 1], [], []>} : vector<10x32xf32>, vector<32x20xf32>, vector<10x20xf32> -> vector<10x20xf32>
    %19 = vector.extract_strided_slice %10 {offsets = [0, 128], sizes = [10, 32], strides = [1, 1]} : vector<10x160xf32> to vector<10x32xf32>
    %cst_13 = arith.constant dense<0.000000e+00> : vector<10x20xf32>
    %20 = tpu.matmul %19, %5, %cst_13 {dimension_numbers = #tpu.dot_dimension_numbers<[1], [0], [0], [1], [0, 0, 1, 1], [], []>} : vector<10x32xf32>, vector<32x20xf32>, vector<10x20xf32> -> vector<10x20xf32>
    %c0_14 = arith.constant 0 : index
    %c0_15 = arith.constant 0 : index
    %c0_16 = arith.constant 0 : index
    %21 = vector.load %arg5[%c0_14, %c0_15, %c0_16] : memref<1x1x20xf32, #tpu.memory_space<vmem>>, vector<1x1x20xf32>
    %22 = vector.shape_cast %21 : vector<1x1x20xf32> to vector<1x20xf32>
    %c0_17 = arith.constant 0 : index
    %c0_18 = arith.constant 0 : index
    %c0_19 = arith.constant 0 : index
    %23 = vector.load %arg6[%c0_17, %c0_18, %c0_19] : memref<1x1x20xf32, #tpu.memory_space<vmem>>, vector<1x1x20xf32>
    %24 = vector.shape_cast %23 : vector<1x1x20xf32> to vector<1x20xf32>
    %c0_20 = arith.constant 0 : index
    %c0_21 = arith.constant 0 : index
    %c0_22 = arith.constant 0 : index
    %25 = vector.load %arg7[%c0_20, %c0_21, %c0_22] : memref<1x1x20xf32, #tpu.memory_space<vmem>>, vector<1x1x20xf32>
    %26 = vector.shape_cast %25 : vector<1x1x20xf32> to vector<1x20xf32>
    %27 = arith.mulf %12, %12 : vector<10x20xf32>
    %28 = arith.subf %16, %27 : vector<10x20xf32>
    %cst_23 = arith.constant 1.02083337 : f32
    %29 = vector.broadcast %cst_23 : f32 to vector<10x20xf32>
    %30 = arith.mulf %29, %28 : vector<10x20xf32>
    %31 = arith.mulf %14, %14 : vector<10x20xf32>
    %32 = arith.subf %18, %31 : vector<10x20xf32>
    %cst_24 = arith.constant 1.02083337 : f32
    %33 = vector.broadcast %cst_24 : f32 to vector<10x20xf32>
    %34 = arith.mulf %33, %32 : vector<10x20xf32>
    %35 = arith.mulf %12, %14 : vector<10x20xf32>
    %36 = arith.subf %20, %35 : vector<10x20xf32>
    %cst_25 = arith.constant 1.02083337 : f32
    %37 = vector.broadcast %cst_25 : f32 to vector<10x20xf32>
    %38 = arith.mulf %37, %36 : vector<10x20xf32>
    %cst_26 = arith.constant 2.000000e+00 : f32
    %39 = vector.broadcast %cst_26 : f32 to vector<10x20xf32>
    %40 = arith.mulf %39, %12 : vector<10x20xf32>
    %41 = arith.mulf %40, %14 : vector<10x20xf32>
    %42 = vector.broadcast %22 : vector<1x20xf32> to vector<10x20xf32>
    %43 = arith.addf %41, %42 : vector<10x20xf32>
    %cst_27 = arith.constant 2.000000e+00 : f32
    %44 = vector.broadcast %cst_27 : f32 to vector<10x20xf32>
    %45 = arith.mulf %44, %38 : vector<10x20xf32>
    %46 = vector.broadcast %24 : vector<1x20xf32> to vector<10x20xf32>
    %47 = arith.addf %45, %46 : vector<10x20xf32>
    %48 = arith.mulf %12, %12 : vector<10x20xf32>
    %49 = arith.mulf %14, %14 : vector<10x20xf32>
    %50 = arith.addf %48, %49 : vector<10x20xf32>
    %51 = vector.broadcast %22 : vector<1x20xf32> to vector<10x20xf32>
    %52 = arith.addf %50, %51 : vector<10x20xf32>
    %53 = arith.addf %30, %34 : vector<10x20xf32>
    %54 = vector.broadcast %24 : vector<1x20xf32> to vector<10x20xf32>
    %55 = arith.addf %53, %54 : vector<10x20xf32>
    %56 = arith.mulf %43, %47 : vector<10x20xf32>
    %57 = arith.mulf %52, %55 : vector<10x20xf32>
    %58 = arith.divf %56, %57 : vector<10x20xf32>
    %59 = vector.broadcast %26 : vector<1x20xf32> to vector<10x20xf32>
    %60 = arith.mulf %58, %59 : vector<10x20xf32>
    %61 = vector.shape_cast %60 : vector<10x20xf32> to vector<1x10x20xf32>
    %cst_28 = arith.constant dense<0.000000e+00> : vector<1xf32>
    %62 = vector.multi_reduction <add>, %61, %cst_28 [1, 2] : vector<1x10x20xf32> to vector<1xf32>
    %63 = vector.shape_cast %62 : vector<1xf32> to vector<1x1x1xf32>
    %64 = vector.extract %63[0, 0, 0] : f32 from vector<1x1x1xf32>
    %65 = vector.broadcast %64 : f32 to vector<1x1x1xf32>
    %c0_29 = arith.constant 0 : index
    %c0_30 = arith.constant 0 : index
    %c0_31 = arith.constant 0 : index
    %66 = vector.load %arg8[%c0_29, %c0_30, %c0_31] : memref<1x1x1xf32, #tpu.memory_space<vmem>>, vector<1x1x1xf32>
    tpu.vector_store %arg8[%c0_29, %c0_30, %c0_31], %65 {strides = array<i32>} : memref<1x1x1xf32, #tpu.memory_space<vmem>>, vector<1x1x1xf32>,
    return
  }
  func.func @transform_0(%arg0: i32) -> (i32, i32, i32) {
    %c0_i32 = arith.constant 0 : i32
    %c0_i32_0 = arith.constant 0 : i32
    %c0_i32_1 = arith.constant 0 : i32
    return %arg0, %c0_i32, %c0_i32_0 : i32, i32, i32
  }
  func.func @transform_1(%arg0: i32) -> (i32, i32, i32) {
    %c0_i32 = arith.constant 0 : i32
    %c0_i32_0 = arith.constant 0 : i32
    %c0_i32_1 = arith.constant 0 : i32
    return %arg0, %c0_i32, %c0_i32_0 : i32, i32, i32
  }
  func.func @transform_2(%arg0: i32) -> (i32, i32) {
    %c0_i32 = arith.constant 0 : i32
    %c0_i32_0 = arith.constant 0 : i32
    %c0_i32_1 = arith.constant 0 : i32
    return %c0_i32, %c0_i32_0 : i32, i32
  }
  func.func @transform_3(%arg0: i32) -> (i32, i32) {
    %c0_i32 = arith.constant 0 : i32
    %c0_i32_0 = arith.constant 0 : i32
    %c0_i32_1 = arith.constant 0 : i32
    return %c0_i32, %c0_i32_0 : i32, i32
  }
  func.func @transform_4(%arg0: i32) -> (i32, i32, i32) {
    %c0_i32 = arith.constant 0 : i32
    %c0_i32_0 = arith.constant 0 : i32
    %c0_i32_1 = arith.constant 0 : i32
    return %arg0, %c0_i32, %c0_i32_0 : i32, i32, i32
  }
  func.func @transform_5(%arg0: i32) -> (i32, i32, i32) {
    %c0_i32 = arith.constant 0 : i32
    %c0_i32_0 = arith.constant 0 : i32
    %c0_i32_1 = arith.constant 0 : i32
    return %arg0, %c0_i32, %c0_i32_0 : i32, i32, i32
  }
  func.func @transform_6(%arg0: i32) -> (i32, i32, i32) {
    %c0_i32 = arith.constant 0 : i32
    %c0_i32_0 = arith.constant 0 : i32
    %c0_i32_1 = arith.constant 0 : i32
    return %arg0, %c0_i32, %c0_i32_0 : i32, i32, i32
  }
  func.func @transform_7(%arg0: i32) -> (i32, i32, i32) {
    %c0_i32 = arith.constant 0 : i32
    %c0_i32_0 = arith.constant 0 : i32
    %c0_i32_1 = arith.constant 0 : i32
    return %arg0, %c0_i32, %c0_i32_0 : i32, i32, i32
  }
}

</mosaic_0001>

<llo_original>
// kernel: tpu_custom_call.1
$region0: #{tpu_custom_call.1}
  #allocation0 [shape = 'u32[]', space=smem, size = 0x4, offset = 0x4, fixed_abs, tag = 'smem constant byte address 0x4 - core index']
  #allocation1 [shape = 'u32[144,128]{1,0:T(1,128)}', space=vmem, size = 0x12000, scoped, tag = 'internal scratch']
  %s0 = inlined_call_operand.vmem [shape: f32[1,16,32], index: 0, kind: input, shape index: {}]
  %s1 = inlined_call_operand.vmem [shape: f32[1,16,32], index: 1, kind: input, shape index: {}]
  %s2 = inlined_call_operand.vmem [shape: f32[10,16], index: 2, kind: input, shape index: {}]
  %s3 = inlined_call_operand.vmem [shape: f32[32,20], index: 3, kind: input, shape index: {}]
  %s4 = inlined_call_operand.vmem [shape: f32[1,1,20], index: 4, kind: input, shape index: {}]
  %s5 = inlined_call_operand.vmem [shape: f32[1,1,20], index: 5, kind: input, shape index: {}]
  %s6 = inlined_call_operand.vmem [shape: f32[1,1,20], index: 6, kind: input, shape index: {}]
  %s7 = inlined_call_operand.hbm [shape: f32[1,1,1], index: 7, kind: output, shape index: {}]
  %s8 = sld [smem:[#allocation0]]
  $region38: #{tpu_custom_call.1} parent=0
    _
  %s10 = ssub.s32 1, %s8
  %s11 = scalar_select 0, %s10, %s8
  $region1: #{tpu_custom_call.1} parent=0
    #allocation2 [shape = 'u8[512]{0}', space=vmem, size = 0x400, scoped, tag = 'output window, operand 0, single buffered']
    #allocation3 [shape = 's32[1]{0}', space=sflag, size = 0x4, scoped, tag = 'scoped memory for tpu_custom_call.1']
    %12 = vsyncpa [#allocation3], 0
    // Predicated region
    $region2: #{tpu_custom_call.1} parent=1 // pred_check
      _
    $region3: #{tpu_custom_call.1} parent=1 // pred_check_branch
      %14 = sbr.rel (0) target = $region5
    $region4: #{tpu_custom_call.1} parent=1 // pred_region
      _
    $region5: #{tpu_custom_call.1} parent=1 // pred_fallthru
      _
    // Predicated region
    $region6: #{tpu_custom_call.1} parent=1 // pred_check
      _
    $region7: #{tpu_custom_call.1} parent=1 // pred_check_branch
      %16 = sbr.rel (0) target = $region9
    $region8: #{tpu_custom_call.1} parent=1 // pred_region
      _
    $region9: #{tpu_custom_call.1} parent=1 // pred_fallthru
      _
    // Predicated region
    $region10: #{tpu_custom_call.1} parent=1 // pred_check
      _
    $region11: #{tpu_custom_call.1} parent=1 // pred_check_branch
      %18 = sbr.rel (0) target = $region13
    $region12: #{tpu_custom_call.1} parent=1 // pred_region
      _
    $region13: #{tpu_custom_call.1} parent=1 // pred_fallthru
      _
    // Predicated region
    $region14: #{tpu_custom_call.1} parent=1 // pred_check
      _
    $region15: #{tpu_custom_call.1} parent=1 // pred_check_branch
      %20 = sbr.rel (0) target = $region17
    $region16: #{tpu_custom_call.1} parent=1 // pred_region
      _
    $region17: #{tpu_custom_call.1} parent=1 // pred_fallthru
      _
    // Predicated region
    $region18: #{tpu_custom_call.1} parent=1 // pred_check
      _
    $region19: #{tpu_custom_call.1} parent=1 // pred_check_branch
      %22 = sbr.rel (0) target = $region21
    $region20: #{tpu_custom_call.1} parent=1 // pred_region
      _
    $region21: #{tpu_custom_call.1} parent=1 // pred_fallthru
      _
    // Predicated region
    $region22: #{tpu_custom_call.1} parent=1 // pred_check
      _
    $region23: #{tpu_custom_call.1} parent=1 // pred_check_branch
      %24 = sbr.rel (0) target = $region25
    $region24: #{tpu_custom_call.1} parent=1 // pred_region
      _
    $region25: #{tpu_custom_call.1} parent=1 // pred_fallthru
      _
    // Predicated region
    $region26: #{tpu_custom_call.1} parent=1 // pred_check
      _
    $region27: #{tpu_custom_call.1} parent=1 // pred_check_branch
      %26 = sbr.rel (0) target = $region29
    $region28: #{tpu_custom_call.1} parent=1 // pred_region
      _
    $region29: #{tpu_custom_call.1} parent=1 // pred_fallthru
      _
    %v27 = vld [vmem:[%s0] sm:$0xff]
    %v28 = vld [vmem:[%s0 + $0x8] sm:$0xff]
    %v29 = vld [vmem:[%s1] sm:$0xff]
    %v30 = vld [vmem:[%s1 + $0x8] sm:$0xff]
    %v31 = vld [vmem:[%s2] sm:$0xff]
    %v32 = vld [vmem:[%s2 + $0x8] sm:$0x3]
    %v33 = vld [vmem:[%s3] sm:$0xff]
    %v34 = vld [vmem:[%s3 + $0x8] sm:$0xff]
    %v35 = vld [vmem:[%s3 + $0x10] sm:$0xff]
    %v36 = vld [vmem:[%s3 + $0x18] sm:$0xff]
    %v37 = vmul.f32 %v27, %v27
    %v38 = vmul.f32 %v28, %v28
    %v39 = vmul.f32 %v29, %v29
    %v40 = vmul.f32 %v30, %v30
    %v41 = vmul.f32 %v27, %v29
    %v42 = vmul.f32 %v28, %v30
    %45 = vrot.lane.b32.xlu0 %v29, 32
    %v46 = vpop.permute.xlu0 %45
    %47 = vrot.lane.b32.xlu0 %v30, 32
    %v48 = vpop.permute.xlu0 %47
    %53 = vrot.lane.b32.xlu0 %v37, 64
    %v54 = vpop.permute.xlu0 %53
    %55 = vrot.lane.b32.xlu0 %v38, 64
    %v56 = vpop.permute.xlu0 %55
    %61 = vrot.lane.b32.xlu0 %v39, 96
    %v62 = vpop.permute.xlu0 %61
    %63 = vrot.lane.b32.xlu0 %v40, 96
    %v64 = vpop.permute.xlu0 %63
    %vm67 = vcmask 261120
    %v68 = vsel %vm67, %v27, %v46
    %v69 = vsel %vm67, %v28, %v48
    %vm70 = vcmask 523264
    %v71 = vsel %vm70, %v68, %v54
    %v72 = vsel %vm70, %v69, %v56
    %vm73 = vcmask 785408
    %v74 = vsel %vm73, %v71, %v62
    %v75 = vsel %vm73, %v72, %v64
    %vm76 = vcmask 130048
    %v78 = vsel %vm76, %v31, 0
    %v81 = vsel %vm76, %v32, 0
    %83 = vmatprep.subr.mxu0 %v41
    %84 = vmatpush1.msra.mxu0 %v74
    %85 = vmatprep.subr.mxu0 %v42
    %86 = vmatpush1.msra.mxu0 %v75
    %87 = vmatprep.subr.mxu0 0.0
    %88 = vmatpush1.msra.mxu0 0.0
    %89 = vmatprep.subr.mxu0 0.0
    %90 = vmatpush1.msra.mxu0 0.0
    %91 = vmatprep.subr.mxu0 0.0
    %92 = vmatpush1.msra.mxu0 0.0
    %93 = vmatprep.subr.mxu0 0.0
    %94 = vmatpush1.msra.mxu0 0.0
    %95 = vmatprep.subr.mxu0 0.0
    %96 = vmatpush1.msra.mxu0 0.0
    %97 = vmatprep.subr.mxu0 0.0
    %98 = vmatpush1.msra.mxu0 0.0
    %99 = vmatprep.subr.mxu0 0.0
    %100 = vmatpush1.msra.mxu0 0.0
    %101 = vmatprep.subr.mxu0 0.0
    %102 = vmatpush1.msra.mxu0 0.0
    %103 = vmatprep.subr.mxu0 0.0
    %104 = vmatpush1.msra.mxu0 0.0
    %105 = vmatprep.subr.mxu0 0.0
    %106 = vmatpush1.msra.mxu0 0.0
    %107 = vmatprep.subr.mxu0 0.0
    %108 = vmatpush1.msra.mxu0 0.0
    %109 = vmatprep.subr.mxu0 0.0
    %110 = vmatpush1.msra.mxu0 0.0
    %111 = vmatprep.subr.mxu0 0.0
    %112 = vmatpush1.msra.mxu0 0.0
    %113 = vmatprep.subr.mxu0 0.0
    %114 = vmatpush1.msra.mxu0 0.0
    %115 = vmatprep.subr.mxu0 0.0
    %116 = vmatpush1.msra.mxu0 0.0
    %117 = vmatprep.subr.mxu0 0.0
    %118 = vmatpush1.msra.mxu0 0.0
    %119 = vmatprep.subr.mxu0 0.0
    %120 = vmatpush1.msra.mxu0 0.0
    %121 = vmatprep.subr.mxu0 0.0
    %122 = vmatpush1.msra.mxu0 0.0
    %123 = vmatprep.subr.mxu0 0.0
    %124 = vmatpush1.msra.mxu0 0.0
    %125 = vmatprep.subr.mxu0 0.0
    %126 = vmatpush1.msra.mxu0 0.0
    %127 = vmatprep.subr.mxu0 0.0
    %128 = vmatpush1.msra.mxu0 0.0
    %129 = vmatprep.subr.mxu0 0.0
    %130 = vmatpush1.msra.mxu0 0.0
    %131 = vmatprep.subr.mxu0 0.0
    %132 = vmatpush1.msra.mxu0 0.0
    %133 = vmatprep.subr.mxu0 0.0
    %134 = vmatpush1.msra.mxu0 0.0
    %135 = vmatprep.subr.mxu0 0.0
    %136 = vmatpush1.msra.mxu0 0.0
    %137 = vmatprep.subr.mxu0 0.0
    %138 = vmatpush1.msra.mxu0 0.0
    %139 = vmatprep.subr.mxu0 0.0
    %140 = vmatpush1.msra.mxu0 0.0
    %141 = vmatprep.subr.mxu0 0.0
    %142 = vmatpush1.msra.mxu0 0.0
    %143 = vmatprep.subr.mxu0 0.0
    %144 = vmatpush1.msra.mxu0 0.0
    %145 = vmatprep.subr.mxu0 0.0
    %146 = vmatpush1.msra.mxu0 0.0
    %147 = vmatprep.mubr.f32.mxu0 0.0
    %148 = vmatmul.mubr.f32.gmra.mrb[0].mxu0 %v78
    %v149 = vpop.f32.mrb[0].mxu0
    %v150 = vadd.f32 0.0, %v149
    %v151 = vpop.f32.mrb[0].mxu0
    %v152 = vadd.f32 0.0, %v151
    %153 = vmatprep.mubr.f32.mxu0 0.0
    %154 = vmatmul.mubr.f32.gmra.mrb[0].mxu0 %v81
    %v155 = vpop.f32.mrb[0].mxu0
    %v156 = vadd.f32 0.0, %v155
    %v157 = vpop.f32.mrb[0].mxu0
    %v158 = vadd.f32 0.0, %v157
    %159 = vdwg.mxu0
    %v161 = vsel %vm67, %v150, 0
    %v164 = vsel %vm67, %v156, 0
    %166 = vmatprep.subr.mxu0 0.0
    %167 = vmatpush1.msra.mxu0 %v33
    %168 = vmatprep.subr.mxu0 0.0
    %169 = vmatpush1.msra.mxu0 %v34
    %170 = vmatprep.subr.mxu0 0.0
    %171 = vmatpush1.msra.mxu0 %v35
    %172 = vmatprep.subr.mxu0 0.0
    %173 = vmatpush1.msra.mxu0 %v36
    %174 = vmatprep.subr.mxu0 0.0
    %175 = vmatpush1.msra.mxu0 0.0
    %176 = vmatprep.subr.mxu0 0.0
    %177 = vmatpush1.msra.mxu0 0.0
    %178 = vmatprep.subr.mxu0 0.0
    %179 = vmatpush1.msra.mxu0 0.0
    %180 = vmatprep.subr.mxu0 0.0
    %181 = vmatpush1.msra.mxu0 0.0
    %182 = vmatprep.subr.mxu0 0.0
    %183 = vmatpush1.msra.mxu0 0.0
    %184 = vmatprep.subr.mxu0 0.0
    %185 = vmatpush1.msra.mxu0 0.0
    %186 = vmatprep.subr.mxu0 0.0
    %187 = vmatpush1.msra.mxu0 0.0
    %188 = vmatprep.subr.mxu0 0.0
    %189 = vmatpush1.msra.mxu0 0.0
    %190 = vmatprep.subr.mxu0 0.0
    %191 = vmatpush1.msra.mxu0 0.0
    %192 = vmatprep.subr.mxu0 0.0
    %193 = vmatpush1.msra.mxu0 0.0
    %194 = vmatprep.subr.mxu0 0.0
    %195 = vmatpush1.msra.mxu0 0.0
    %196 = vmatprep.subr.mxu0 0.0
    %197 = vmatpush1.msra.mxu0 0.0
    %198 = vmatprep.subr.mxu0 0.0
    %199 = vmatpush1.msra.mxu0 0.0
    %200 = vmatprep.subr.mxu0 0.0
    %201 = vmatpush1.msra.mxu0 0.0
    %202 = vmatprep.subr.mxu0 0.0
    %203 = vmatpush1.msra.mxu0 0.0
    %204 = vmatprep.subr.mxu0 0.0
    %205 = vmatpush1.msra.mxu0 0.0
    %206 = vmatprep.subr.mxu0 0.0
    %207 = vmatpush1.msra.mxu0 0.0
    %208 = vmatprep.subr.mxu0 0.0
    %209 = vmatpush1.msra.mxu0 0.0
    %210 = vmatprep.subr.mxu0 0.0
    %211 = vmatpush1.msra.mxu0 0.0
    %212 = vmatprep.subr.mxu0 0.0
    %213 = vmatpush1.msra.mxu0 0.0
    %214 = vmatprep.subr.mxu0 0.0
    %215 = vmatpush1.msra.mxu0 0.0
    %216 = vmatprep.subr.mxu0 0.0
    %217 = vmatpush1.msra.mxu0 0.0
    %218 = vmatprep.subr.mxu0 0.0
    %219 = vmatpush1.msra.mxu0 0.0
    %220 = vmatprep.subr.mxu0 0.0
    %221 = vmatpush1.msra.mxu0 0.0
    %222 = vmatprep.subr.mxu0 0.0
    %223 = vmatpush1.msra.mxu0 0.0
    %224 = vmatprep.subr.mxu0 0.0
    %225 = vmatpush1.msra.mxu0 0.0
    %226 = vmatprep.subr.mxu0 0.0
    %227 = vmatpush1.msra.mxu0 0.0
    %228 = vmatprep.subr.mxu0 0.0
    %229 = vmatpush1.msra.mxu0 0.0
    %230 = vmatprep.mubr.f32.mxu0 0.0
    %231 = vmatmul.mubr.f32.gmra.mrb[0].mxu0 %v161
    %v232 = vpop.f32.mrb[0].mxu0
    %v233 = vadd.f32 0.0, %v232
    %v234 = vpop.f32.mrb[0].mxu0
    %235 = vmatprep.mubr.f32.mxu0 0.0
    %236 = vmatmul.mubr.f32.gmra.mrb[0].mxu0 %v164
    %v237 = vpop.f32.mrb[0].mxu0
    %v238 = vadd.f32 0.0, %v237
    %v239 = vpop.f32.mrb[0].mxu0
    %240 = vdwg.mxu0
    %241 = vrot.lane.b32.xlu0 %v150, 96
    %v242 = vpop.permute.xlu0 %241
    %243 = vrot.lane.b32.xlu0 %v156, 96
    %v244 = vpop.permute.xlu0 %243
    %v245 = vsel %vm67, %v242, 0
    %v247 = vsel %vm67, %v244, 0
    %249 = vmatprep.subr.mxu0 0.0
    %250 = vmatpush1.msra.mxu0 %v33
    %251 = vmatprep.subr.mxu0 0.0
    %252 = vmatpush1.msra.mxu0 %v34
    %253 = vmatprep.subr.mxu0 0.0
    %254 = vmatpush1.msra.mxu0 %v35
    %255 = vmatprep.subr.mxu0 0.0
    %256 = vmatpush1.msra.mxu0 %v36
    %257 = vmatprep.subr.mxu0 0.0
    %258 = vmatpush1.msra.mxu0 0.0
    %259 = vmatprep.subr.mxu0 0.0
    %260 = vmatpush1.msra.mxu0 0.0
    %261 = vmatprep.subr.mxu0 0.0
    %262 = vmatpush1.msra.mxu0 0.0
    %263 = vmatprep.subr.mxu0 0.0
    %264 = vmatpush1.msra.mxu0 0.0
    %265 = vmatprep.subr.mxu0 0.0
    %266 = vmatpush1.msra.mxu0 0.0
    %267 = vmatprep.subr.mxu0 0.0
    %268 = vmatpush1.msra.mxu0 0.0
    %269 = vmatprep.subr.mxu0 0.0
    %270 = vmatpush1.msra.mxu0 0.0
    %271 = vmatprep.subr.mxu0 0.0
    %272 = vmatpush1.msra.mxu0 0.0
    %273 = vmatprep.subr.mxu0 0.0
    %274 = vmatpush1.msra.mxu0 0.0
    %275 = vmatprep.subr.mxu0 0.0
    %276 = vmatpush1.msra.mxu0 0.0
    %277 = vmatprep.subr.mxu0 0.0
    %278 = vmatpush1.msra.mxu0 0.0
    %279 = vmatprep.subr.mxu0 0.0
    %280 = vmatpush1.msra.mxu0 0.0
    %281 = vmatprep.subr.mxu0 0.0
    %282 = vmatpush1.msra.mxu0 0.0
    %283 = vmatprep.subr.mxu0 0.0
    %284 = vmatpush1.msra.mxu0 0.0
    %285 = vmatprep.subr.mxu0 0.0
    %286 = vmatpush1.msra.mxu0 0.0
    %287 = vmatprep.subr.mxu0 0.0
    %288 = vmatpush1.msra.mxu0 0.0
    %289 = vmatprep.subr.mxu0 0.0
    %290 = vmatpush1.msra.mxu0 0.0
    %291 = vmatprep.subr.mxu0 0.0
    %292 = vmatpush1.msra.mxu0 0.0
    %293 = vmatprep.subr.mxu0 0.0
    %294 = vmatpush1.msra.mxu0 0.0
    %295 = vmatprep.subr.mxu0 0.0
    %296 = vmatpush1.msra.mxu0 0.0
    %297 = vmatprep.subr.mxu0 0.0
    %298 = vmatpush1.msra.mxu0 0.0
    %299 = vmatprep.subr.mxu0 0.0
    %300 = vmatpush1.msra.mxu0 0.0
    %301 = vmatprep.subr.mxu0 0.0
    %302 = vmatpush1.msra.mxu0 0.0
    %303 = vmatprep.subr.mxu0 0.0
    %304 = vmatpush1.msra.mxu0 0.0
    %305 = vmatprep.subr.mxu0 0.0
    %306 = vmatpush1.msra.mxu0 0.0
    %307 = vmatprep.subr.mxu0 0.0
    %308 = vmatpush1.msra.mxu0 0.0
    %309 = vmatprep.subr.mxu0 0.0
    %310 = vmatpush1.msra.mxu0 0.0
    %311 = vmatprep.subr.mxu0 0.0
    %312 = vmatpush1.msra.mxu0 0.0
    %313 = vmatprep.mubr.f32.mxu0 0.0
    %314 = vmatmul.mubr.f32.gmra.mrb[0].mxu0 %v245
    %v315 = vpop.f32.mrb[0].mxu0
    %v316 = vadd.f32 0.0, %v315
    %v317 = vpop.f32.mrb[0].mxu0
    %318 = vmatprep.mubr.f32.mxu0 0.0
    %319 = vmatmul.mubr.f32.gmra.mrb[0].mxu0 %v247
    %v320 = vpop.f32.mrb[0].mxu0
    %v321 = vadd.f32 0.0, %v320
    %v322 = vpop.f32.mrb[0].mxu0
    %323 = vdwg.mxu0
    %324 = vrot.lane.b32.xlu0 %v150, 64
    %v325 = vpop.permute.xlu0 %324
    %326 = vrot.lane.b32.xlu0 %v156, 64
    %v327 = vpop.permute.xlu0 %326
    %v328 = vsel %vm67, %v325, 0
    %v330 = vsel %vm67, %v327, 0
    %332 = vmatprep.subr.mxu0 0.0
    %333 = vmatpush1.msra.mxu0 %v33
    %334 = vmatprep.subr.mxu0 0.0
    %335 = vmatpush1.msra.mxu0 %v34
    %336 = vmatprep.subr.mxu0 0.0
    %337 = vmatpush1.msra.mxu0 %v35
    %338 = vmatprep.subr.mxu0 0.0
    %339 = vmatpush1.msra.mxu0 %v36
    %340 = vmatprep.subr.mxu0 0.0
    %341 = vmatpush1.msra.mxu0 0.0
    %342 = vmatprep.subr.mxu0 0.0
    %343 = vmatpush1.msra.mxu0 0.0
    %344 = vmatprep.subr.mxu0 0.0
    %345 = vmatpush1.msra.mxu0 0.0
    %346 = vmatprep.subr.mxu0 0.0
    %347 = vmatpush1.msra.mxu0 0.0
    %348 = vmatprep.subr.mxu0 0.0
    %349 = vmatpush1.msra.mxu0 0.0
    %350 = vmatprep.subr.mxu0 0.0
    %351 = vmatpush1.msra.mxu0 0.0
    %352 = vmatprep.subr.mxu0 0.0
    %353 = vmatpush1.msra.mxu0 0.0
    %354 = vmatprep.subr.mxu0 0.0
    %355 = vmatpush1.msra.mxu0 0.0
    %356 = vmatprep.subr.mxu0 0.0
    %357 = vmatpush1.msra.mxu0 0.0
    %358 = vmatprep.subr.mxu0 0.0
    %359 = vmatpush1.msra.mxu0 0.0
    %360 = vmatprep.subr.mxu0 0.0
    %361 = vmatpush1.msra.mxu0 0.0
    %362 = vmatprep.subr.mxu0 0.0
    %363 = vmatpush1.msra.mxu0 0.0
    %364 = vmatprep.subr.mxu0 0.0
    %365 = vmatpush1.msra.mxu0 0.0
    %366 = vmatprep.subr.mxu0 0.0
    %367 = vmatpush1.msra.mxu0 0.0
    %368 = vmatprep.subr.mxu0 0.0
    %369 = vmatpush1.msra.mxu0 0.0
    %370 = vmatprep.subr.mxu0 0.0
    %371 = vmatpush1.msra.mxu0 0.0
    %372 = vmatprep.subr.mxu0 0.0
    %373 = vmatpush1.msra.mxu0 0.0
    %374 = vmatprep.subr.mxu0 0.0
    %375 = vmatpush1.msra.mxu0 0.0
    %376 = vmatprep.subr.mxu0 0.0
    %377 = vmatpush1.msra.mxu0 0.0
    %378 = vmatprep.subr.mxu0 0.0
    %379 = vmatpush1.msra.mxu0 0.0
    %380 = vmatprep.subr.mxu0 0.0
    %381 = vmatpush1.msra.mxu0 0.0
    %382 = vmatprep.subr.mxu0 0.0
    %383 = vmatpush1.msra.mxu0 0.0
    %384 = vmatprep.subr.mxu0 0.0
    %385 = vmatpush1.msra.mxu0 0.0
    %386 = vmatprep.subr.mxu0 0.0
    %387 = vmatpush1.msra.mxu0 0.0
    %388 = vmatprep.subr.mxu0 0.0
    %389 = vmatpush1.msra.mxu0 0.0
    %390 = vmatprep.subr.mxu0 0.0
    %391 = vmatpush1.msra.mxu0 0.0
    %392 = vmatprep.subr.mxu0 0.0
    %393 = vmatpush1.msra.mxu0 0.0
    %394 = vmatprep.subr.mxu0 0.0
    %395 = vmatpush1.msra.mxu0 0.0
    %396 = vmatprep.mubr.f32.mxu0 0.0
    %397 = vmatmul.mubr.f32.gmra.mrb[0].mxu0 %v328
    %v398 = vpop.f32.mrb[0].mxu0
    %v399 = vadd.f32 0.0, %v398
    %v400 = vpop.f32.mrb[0].mxu0
    %401 = vmatprep.mubr.f32.mxu0 0.0
    %402 = vmatmul.mubr.f32.gmra.mrb[0].mxu0 %v330
    %v403 = vpop.f32.mrb[0].mxu0
    %v404 = vadd.f32 0.0, %v403
    %v405 = vpop.f32.mrb[0].mxu0
    %406 = vdwg.mxu0
    %407 = vrot.lane.b32.xlu0 %v150, 32
    %v408 = vpop.permute.xlu0 %407
    %409 = vrot.lane.b32.xlu0 %v156, 32
    %v410 = vpop.permute.xlu0 %409
    %v411 = vsel %vm67, %v408, 0
    %v413 = vsel %vm67, %v410, 0
    %415 = vmatprep.subr.mxu0 0.0
    %416 = vmatpush1.msra.mxu0 %v33
    %417 = vmatprep.subr.mxu0 0.0
    %418 = vmatpush1.msra.mxu0 %v34
    %419 = vmatprep.subr.mxu0 0.0
    %420 = vmatpush1.msra.mxu0 %v35
    %421 = vmatprep.subr.mxu0 0.0
    %422 = vmatpush1.msra.mxu0 %v36
    %423 = vmatprep.subr.mxu0 0.0
    %424 = vmatpush1.msra.mxu0 0.0
    %425 = vmatprep.subr.mxu0 0.0
    %426 = vmatpush1.msra.mxu0 0.0
    %427 = vmatprep.subr.mxu0 0.0
    %428 = vmatpush1.msra.mxu0 0.0
    %429 = vmatprep.subr.mxu0 0.0
    %430 = vmatpush1.msra.mxu0 0.0
    %431 = vmatprep.subr.mxu0 0.0
    %432 = vmatpush1.msra.mxu0 0.0
    %433 = vmatprep.subr.mxu0 0.0
    %434 = vmatpush1.msra.mxu0 0.0
    %435 = vmatprep.subr.mxu0 0.0
    %436 = vmatpush1.msra.mxu0 0.0
    %437 = vmatprep.subr.mxu0 0.0
    %438 = vmatpush1.msra.mxu0 0.0
    %439 = vmatprep.subr.mxu0 0.0
    %440 = vmatpush1.msra.mxu0 0.0
    %441 = vmatprep.subr.mxu0 0.0
    %442 = vmatpush1.msra.mxu0 0.0
    %443 = vmatprep.subr.mxu0 0.0
    %444 = vmatpush1.msra.mxu0 0.0
    %445 = vmatprep.subr.mxu0 0.0
    %446 = vmatpush1.msra.mxu0 0.0
    %447 = vmatprep.subr.mxu0 0.0
    %448 = vmatpush1.msra.mxu0 0.0
    %449 = vmatprep.subr.mxu0 0.0
    %450 = vmatpush1.msra.mxu0 0.0
    %451 = vmatprep.subr.mxu0 0.0
    %452 = vmatpush1.msra.mxu0 0.0
    %453 = vmatprep.subr.mxu0 0.0
    %454 = vmatpush1.msra.mxu0 0.0
    %455 = vmatprep.subr.mxu0 0.0
    %456 = vmatpush1.msra.mxu0 0.0
    %457 = vmatprep.subr.mxu0 0.0
    %458 = vmatpush1.msra.mxu0 0.0
    %459 = vmatprep.subr.mxu0 0.0
    %460 = vmatpush1.msra.mxu0 0.0
    %461 = vmatprep.subr.mxu0 0.0
    %462 = vmatpush1.msra.mxu0 0.0
    %463 = vmatprep.subr.mxu0 0.0
    %464 = vmatpush1.msra.mxu0 0.0
    %465 = vmatprep.subr.mxu0 0.0
    %466 = vmatpush1.msra.mxu0 0.0
    %467 = vmatprep.subr.mxu0 0.0
    %468 = vmatpush1.msra.mxu0 0.0
    %469 = vmatprep.subr.mxu0 0.0
    %470 = vmatpush1.msra.mxu0 0.0
    %471 = vmatprep.subr.mxu0 0.0
    %472 = vmatpush1.msra.mxu0 0.0
    %473 = vmatprep.subr.mxu0 0.0
    %474 = vmatpush1.msra.mxu0 0.0
    %475 = vmatprep.subr.mxu0 0.0
    %476 = vmatpush1.msra.mxu0 0.0
    %477 = vmatprep.subr.mxu0 0.0
    %478 = vmatpush1.msra.mxu0 0.0
    %479 = vmatprep.mubr.f32.mxu0 0.0
    %480 = vmatmul.mubr.f32.gmra.mrb[0].mxu0 %v411
    %v481 = vpop.f32.mrb[0].mxu0
    %v482 = vadd.f32 0.0, %v481
    %v483 = vpop.f32.mrb[0].mxu0
    %484 = vmatprep.mubr.f32.mxu0 0.0
    %485 = vmatmul.mubr.f32.gmra.mrb[0].mxu0 %v413
    %v486 = vpop.f32.mrb[0].mxu0
    %v487 = vadd.f32 0.0, %v486
    %v488 = vpop.f32.mrb[0].mxu0
    %489 = vdwg.mxu0
    %v491 = vsel %vm67, %v152, 0
    %v494 = vsel %vm67, %v158, 0
    %496 = vmatprep.subr.mxu0 0.0
    %497 = vmatpush1.msra.mxu0 %v33
    %498 = vmatprep.subr.mxu0 0.0
    %499 = vmatpush1.msra.mxu0 %v34
    %500 = vmatprep.subr.mxu0 0.0
    %501 = vmatpush1.msra.mxu0 %v35
    %502 = vmatprep.subr.mxu0 0.0
    %503 = vmatpush1.msra.mxu0 %v36
    %504 = vmatprep.subr.mxu0 0.0
    %505 = vmatpush1.msra.mxu0 0.0
    %506 = vmatprep.subr.mxu0 0.0
    %507 = vmatpush1.msra.mxu0 0.0
    %508 = vmatprep.subr.mxu0 0.0
    %509 = vmatpush1.msra.mxu0 0.0
    %510 = vmatprep.subr.mxu0 0.0
    %511 = vmatpush1.msra.mxu0 0.0
    %512 = vmatprep.subr.mxu0 0.0
    %513 = vmatpush1.msra.mxu0 0.0
    %514 = vmatprep.subr.mxu0 0.0
    %515 = vmatpush1.msra.mxu0 0.0
    %516 = vmatprep.subr.mxu0 0.0
    %517 = vmatpush1.msra.mxu0 0.0
    %518 = vmatprep.subr.mxu0 0.0
    %519 = vmatpush1.msra.mxu0 0.0
    %520 = vmatprep.subr.mxu0 0.0
    %521 = vmatpush1.msra.mxu0 0.0
    %522 = vmatprep.subr.mxu0 0.0
    %523 = vmatpush1.msra.mxu0 0.0
    %524 = vmatprep.subr.mxu0 0.0
    %525 = vmatpush1.msra.mxu0 0.0
    %526 = vmatprep.subr.mxu0 0.0
    %527 = vmatpush1.msra.mxu0 0.0
    %528 = vmatprep.subr.mxu0 0.0
    %529 = vmatpush1.msra.mxu0 0.0
    %530 = vmatprep.subr.mxu0 0.0
    %531 = vmatpush1.msra.mxu0 0.0
    %532 = vmatprep.subr.mxu0 0.0
    %533 = vmatpush1.msra.mxu0 0.0
    %534 = vmatprep.subr.mxu0 0.0
    %535 = vmatpush1.msra.mxu0 0.0
    %536 = vmatprep.subr.mxu0 0.0
    %537 = vmatpush1.msra.mxu0 0.0
    %538 = vmatprep.subr.mxu0 0.0
    %539 = vmatpush1.msra.mxu0 0.0
    %540 = vmatprep.subr.mxu0 0.0
    %541 = vmatpush1.msra.mxu0 0.0
    %542 = vmatprep.subr.mxu0 0.0
    %543 = vmatpush1.msra.mxu0 0.0
    %544 = vmatprep.subr.mxu0 0.0
    %545 = vmatpush1.msra.mxu0 0.0
    %546 = vmatprep.subr.mxu0 0.0
    %547 = vmatpush1.msra.mxu0 0.0
    %548 = vmatprep.subr.mxu0 0.0
    %549 = vmatpush1.msra.mxu0 0.0
    %550 = vmatprep.subr.mxu0 0.0
    %551 = vmatpush1.msra.mxu0 0.0
    %552 = vmatprep.subr.mxu0 0.0
    %553 = vmatpush1.msra.mxu0 0.0
    %554 = vmatprep.subr.mxu0 0.0
    %555 = vmatpush1.msra.mxu0 0.0
    %556 = vmatprep.subr.mxu0 0.0
    %557 = vmatpush1.msra.mxu0 0.0
    %558 = vmatprep.subr.mxu0 0.0
    %559 = vmatpush1.msra.mxu0 0.0
    %560 = vmatprep.mubr.f32.mxu0 0.0
    %561 = vmatmul.mubr.f32.gmra.mrb[0].mxu0 %v491
    %v562 = vpop.f32.mrb[0].mxu0
    %v563 = vadd.f32 0.0, %v562
    %v564 = vpop.f32.mrb[0].mxu0
    %565 = vmatprep.mubr.f32.mxu0 0.0
    %566 = vmatmul.mubr.f32.gmra.mrb[0].mxu0 %v494
    %v567 = vpop.f32.mrb[0].mxu0
    %v568 = vadd.f32 0.0, %v567
    %v569 = vpop.f32.mrb[0].mxu0
    %570 = vdwg.mxu0
    %v571 = vld [vmem:[%s4] sm:$0x1]
    %v572 = vld [vmem:[%s5] sm:$0x1]
    %v573 = vld [vmem:[%s6] sm:$0x1]
    %v574 = vmul.f32 %v233, %v233
    %v575 = vmul.f32 %v238, %v238
    %v576 = vsub.f32 %v399, %v574
    %v577 = vsub.f32 %v404, %v575
    %v578 = vmul.f32 %v576, 1.0208334
    %v579 = vmul.f32 %v577, 1.0208334
    %v580 = vmul.f32 %v316, %v316
    %v581 = vmul.f32 %v321, %v321
    %v582 = vsub.f32 %v482, %v580
    %v583 = vsub.f32 %v487, %v581
    %v584 = vmul.f32 %v582, 1.0208334
    %v585 = vmul.f32 %v583, 1.0208334
    %v586 = vmul.f32 %v233, %v316
    %v587 = vmul.f32 %v238, %v321
    %v588 = vsub.f32 %v563, %v586
    %v589 = vsub.f32 %v568, %v587
    %v590 = vmul.f32 %v588, 1.0208334
    %v591 = vmul.f32 %v589, 1.0208334
    %v592 = vmul.f32 %v233, 2.0
    %v593 = vmul.f32 %v238, 2.0
    %v594 = vmul.f32 %v592, %v316
    %v595 = vmul.f32 %v593, %v321
    %v597 = vlaneseq
    %v598 = vshrl.u32 %v597, 7
    %v599 = vsub.s32 0, %v598
    %v600 = vrot.slane %v571, %v599
    %v602 = vadd.f32 %v594, %v600
    %v603 = vadd.f32 %v595, %v600
    %v604 = vmul.f32 %v590, 2.0
    %v605 = vmul.f32 %v591, 2.0
    %v607 = vlaneseq
    %v608 = vshrl.u32 %v607, 7
    %v609 = vsub.s32 0, %v608
    %v610 = vrot.slane %v572, %v609
    %v612 = vadd.f32 %v604, %v610
    %v613 = vadd.f32 %v605, %v610
    %v614 = vadd.f32 %v574, %v580
    %v615 = vadd.f32 %v575, %v581
    %v616 = vadd.f32 %v614, %v600
    %v617 = vadd.f32 %v615, %v600
    %v618 = vadd.f32 %v578, %v584
    %v619 = vadd.f32 %v579, %v585
    %v620 = vadd.f32 %v618, %v610
    %v621 = vadd.f32 %v619, %v610
    %v622 = vmul.f32 %v602, %v612
    %v623 = vmul.f32 %v603, %v613
    %v624 = vmul.f32 %v616, %v620
    %v625 = vmul.f32 %v617, %v621
    %v626 = vrcp.pop %v624
    %v627 = vmul.f32 %v622, %v626
    %v628 = vrcp.pop %v625
    %v629 = vmul.f32 %v623, %v628
    %v631 = vlaneseq
    %v632 = vshrl.u32 %v631, 7
    %v633 = vsub.s32 0, %v632
    %v634 = vrot.slane %v573, %v633
    %v636 = vmul.f32 %v627, %v634
    %v637 = vmul.f32 %v629, %v634
    %vm638 = vcmask 162816
    %v639 = vsel %vm638, %v636, 0.0
    %vm640 = vcmask 156672
    %v641 = vsel %vm640, %v637, 0.0
    %v642 = vadd.f32 %v639, %v641
    %643 = vadd.xlane.f32.xlu0 %v642
    %v644 = vpop.xlane.xlu0 %643
    %v645 = vrot.slane %v644, 4
    %v646 = vadd.f32 %v644, %v645
    %v647 = vrot.slane %v646, 2
    %v648 = vadd.f32 %v646, %v647
    %v649 = vrot.slane %v648, 1
    %v650 = vadd.f32 %v648, %v649
    %s651 = vtos %v650
    %v652 = vstv %s651
    %vm653 = vcmask 0
    %654 = vst.msk [vmem:[#allocation2] sm:$0x1] %vm653, %v652
    // Predicated region
    $region30: #{tpu_custom_call.1} parent=1 // pred_check
      _
    $region31: #{tpu_custom_call.1} parent=1 // pred_check_branch
      %656 = sbr.rel (0) target = $region33
    $region32: #{tpu_custom_call.1} parent=1 // pred_region
      %s658 = ssub.s32 16, 16
      %659 = vsyncadd [#allocation3], %s658
      %s661 = sshll.u32 [#allocation2], 4
      %s662 = int_to_ptr.vmem [resolvable:$true] %s661
      %664 = dma.vmem_to_hbm [thread:$0]  %s662, 16, %s7, [#allocation3]
    $region33: #{tpu_custom_call.1} parent=1 // pred_fallthru
      _
    // Predicated region
    $region34: #{tpu_custom_call.1} parent=1 // pred_check
      _
    $region35: #{tpu_custom_call.1} parent=1 // pred_check_branch
      %666 = sbr.rel (0) target = $region37
    $region36: #{tpu_custom_call.1} parent=1 // pred_region
      %667 = dma.done [#allocation3], 16
    $region37: #{tpu_custom_call.1} parent=1 // pred_fallthru
      _
    %668 = vsyncpa [#allocation3], 1

</llo_original>
